<compile_context>
chip_gen: v6e
topology: v6e:2x2x1
jax: 0.10.0
libtpu: 0.0.40
codegen_flags: <defaults>
</compile_context>

<pallas_src>
import functools

import jax
import jax.numpy as jnp
from jax import lax
from jax.experimental import pallas as pl
from jax.experimental.pallas import tpu as pltpu


def _round_up(x, m):
    return (x + m - 1) // m * m


# ---------------------------------------------------------------------------
# Fused kernel: hoisted block input-projection GEMM + serial recurrence.
# ---------------------------------------------------------------------------
def _fused_rnn_kernel(x_ref, h0_ref, wxh_ref, whh_ref, bh_ref, out_ref,
                      h_scratch, xp_ref, *, unroll):
    t_blk = pl.program_id(1)

    # (Re-)initialize the recurrent state at the first time block of each
    # batch block.  h0 is only read here.
    @pl.when(t_blk == 0)
    def _():
        h_scratch[...] = h0_ref[...]

    tc, bb, _ = out_ref.shape

    # Hoisted input projection for the whole time block: one GEMM with
    # M = Tc*BB rows (good MXU shape), bias folded in, f32 accumulation.
    # Lives in VMEM scratch -> no HBM round trip.
    xp_ref[...] = (
        jnp.dot(x_ref[...], wxh_ref[...], preferred_element_type=jnp.float32)
        + bh_ref[...]
    )

    def step(i, h):
        row0 = pl.multiple_of(i * bb, bb)
        h_f32 = jnp.tanh(
            xp_ref[pl.ds(row0, bb), :]                               # (BB, Hp) f32
            + jnp.dot(h, whh_ref[...],
                      preferred_element_type=jnp.float32))           # bf16 x bf16 -> f32
        out_ref[i] = h_f32.astype(out_ref.dtype)
        # Single cast per step; the bf16 value is the next-step matmul operand.
        return h_f32.astype(h.dtype)

    h_scratch[...] = lax.fori_loop(0, tc, step, h_scratch[...], unroll=unroll)


def rnn_scratch_forward(inputs, W_xh, W_hh, b_h, state=None, *,
                        time_block=16, batch_block=128,
                        compute_dtype=jnp.bfloat16):
    """Mirrors RNNScratch.forward.

    Returns (stacked per-step states of shape (T, B, H), final state (B, H)).
    """
    T, B, I = inputs.shape
    H = W_xh.shape[1]
    out_dtype = inputs.dtype

    if state is None:
        state = jnp.zeros((B, H), dtype=out_dtype)

    # --- padded / blocked shapes -------------------------------------------
    sub = 16 if compute_dtype == jnp.bfloat16 else 8   # sublane tile of compute dtype
    Hp = _round_up(H, 128)                             # lane-dense hidden dim
    Tc = max(1, min(time_block, T))                    # serial steps per grid step
    Tp = _round_up(T, Tc)
    Bp = _round_up(B, sub)
    BB = min(Bp, _round_up(batch_block, sub))          # batch block ("parallel" axis)
    Bp = _round_up(Bp, BB)
    n_b = Bp // BB
    n_t = Tp // Tc

    # --- padded operands ----------------------------------------------------
    x_pad = jnp.zeros((Tp, Bp, I), dtype=compute_dtype).at[:T, :B, :].set(
        inputs.astype(compute_dtype))
    # Batch-block-major, time-major-within-block layout: each (b, t) grid step
    # reads one contiguous (Tc*BB, I) slab and the projection GEMM is 2-D.
    x_blocks = (x_pad.reshape(Tp, n_b, BB, I)
                     .transpose(1, 0, 2, 3)
                     .reshape(n_b, Tp * BB, I))

    h0_pad = jnp.zeros((Bp, Hp), dtype=compute_dtype).at[:B, :H].set(
        state.astype(compute_dtype))
    wxh_pad = jnp.zeros((I, Hp), dtype=compute_dtype).at[:, :H].set(
        W_xh.astype(compute_dtype))
    whh_pad = jnp.zeros((Hp, Hp), dtype=compute_dtype).at[:H, :H].set(
        W_hh.astype(compute_dtype))
    bh_pad = jnp.zeros((1, Hp), dtype=jnp.float32).at[0, :H].set(
        b_h.astype(jnp.float32))

    # --- VMEM budget (double-buffered inputs/outputs + scratch) -------------
    cd = jnp.dtype(compute_dtype).itemsize
    od = jnp.dtype(out_dtype).itemsize
    blk_bytes = (2 * Tc * BB * I * cd        # x
                 + 2 * Tc * BB * Hp * od     # out
                 + 2 * I * Hp * cd           # W_xh
                 + 2 * Hp * Hp * cd          # W_hh
                 + 2 * BB * Hp * cd          # h0
                 + 2 * Hp * 4                # bias
                 + BB * Hp * cd              # h scratch
                 + Tc * BB * Hp * 4)         # xproj scratch (f32)
    vmem_limit = int(min(max(blk_bytes * 5 // 4, 32 * 1024 * 1024),
                         64 * 1024 * 1024))

    kernel = functools.partial(_fused_rnn_kernel, unroll=Tc <= 16)
    out_pad = pl.pallas_call(
        kernel,
        out_shape=jax.ShapeDtypeStruct((Tp, Bp, Hp), out_dtype),
        grid_spec=pltpu.PrefetchScalarGridSpec(
            num_scalar_prefetch=0,
            grid=(n_b, n_t),
            in_specs=[
                pl.BlockSpec((None, Tc * BB, I), lambda b, t: (b, t, 0)),  # x slab
                pl.BlockSpec((BB, Hp), lambda b, t: (b, 0)),               # h0
                pl.BlockSpec((I, Hp), lambda b, t: (0, 0)),                # W_xh
                pl.BlockSpec((Hp, Hp), lambda b, t: (0, 0)),               # W_hh
                pl.BlockSpec((1, Hp), lambda b, t: (0, 0)),                # b_h
            ],
            out_specs=pl.BlockSpec((Tc, BB, Hp), lambda b, t: (t, b, 0)),
            scratch_shapes=[
                pltpu.VMEM((BB, Hp), compute_dtype),      # persistent recurrent state
                pltpu.VMEM((Tc * BB, Hp), jnp.float32),   # hoisted x-projection
            ],
        ),
        compiler_params=pltpu.CompilerParams(
            dimension_semantics=("parallel", "arbitrary"),
            vmem_limit_bytes=vmem_limit),
    )(x_blocks, h0_pad, wxh_pad, whh_pad, bh_pad)

    outputs = out_pad[:T, :B, :H]       # stacked (T, B, H) per-step states
    final_state = outputs[-1]
    return outputs, final_state


def _reference(inputs, W_xh, W_hh, b_h, state=None):
    T, B, I = inputs.shape
    H = W_xh.shape[1]
    if state is None:
        state = jnp.zeros((B, H), dtype=inputs.dtype)
    outs = []
    for t in range(T):
        state = jnp.tanh(inputs[t] @ W_xh + state @ W_hh + b_h)
        outs.append(state)
    return jnp.stack(outs, axis=0), state


if __name__ == "__main__":
    key = jax.random.PRNGKey(0)
    seq, batch, num_inputs, num_hiddens = 8, 4, 16, 32
    sigma = 0.01

    k_x, k_wxh, k_whh = jax.random.split(key, 3)
    inputs = jax.random.normal(k_x, (seq, batch, num_inputs), dtype=jnp.float32)
    W_xh = jax.random.normal(k_wxh, (num_inputs, num_hiddens),
                             dtype=jnp.float32) * sigma
    W_hh = jax.random.normal(k_whh, (num_hiddens, num_hiddens),
                             dtype=jnp.float32) * sigma
    b_h = jnp.zeros((num_hiddens,), dtype=jnp.float32)

    outputs, final_state = rnn_scratch_forward(inputs, W_xh, W_hh, b_h)
    jax.block_until_ready(outputs)
    jax.block_until_ready(final_state)

    # Sanity-check against the pure-JAX (f32) reference.  bf16 weight / state
    # quantization gives tiny absolute differences at these magnitudes.
    ref_outs, ref_final = _reference(inputs, W_xh, W_hh, b_h)
    assert outputs.shape == (seq, batch, num_hiddens)
    assert jnp.allclose(outputs, ref_outs, atol=1e-2), "per-step state mismatch"
    assert jnp.allclose(final_state, ref_final, atol=1e-2), "final state mismatch"

    print("KERNEL_OK")
</pallas_src>

<mosaic_0001>
module attributes {stable_mosaic.version = 11 : i64} {
  func.func @_fused_rnn_kernel(%arg0: i32, %arg1: i32, %arg2: memref<1x128x16xbf16, #tpu.memory_space<vmem>>, %arg3: memref<16x128xbf16, #tpu.memory_space<vmem>>, %arg4: memref<16x128xbf16, #tpu.memory_space<vmem>>, %arg5: memref<128x128xbf16, #tpu.memory_space<vmem>>, %arg6: memref<1x128xf32, #tpu.memory_space<vmem>>, %arg7: memref<8x16x128xf32, #tpu.memory_space<vmem>>, %arg8: memref<16x128xbf16, #tpu.memory_space<vmem>>, %arg9: memref<128x128xf32, #tpu.memory_space<vmem>>) attributes {dimension_semantics = [#tpu.dimension_semantics<parallel>, #tpu.dimension_semantics<arbitrary>], iteration_bounds = array<i64: 1, 1>, scalar_prefetch = 0 : i64, scratch_operands = 2 : i64, tpu.core_type = #tpu.core_type<tc>, window_params = [{transform_indices = @transform_0, window_bounds = array<i64: 1, 128, 16>}, {transform_indices = @transform_1, window_bounds = array<i64: 16, 128>}, {pipeline_mode = #tpu.pipeline_mode<synchronous>, transform_indices = @transform_2, window_bounds = array<i64: 16, 128>}, {pipeline_mode = #tpu.pipeline_mode<synchronous>, transform_indices = @transform_3, window_bounds = array<i64: 128, 128>}, {pipeline_mode = #tpu.pipeline_mode<synchronous>, transform_indices = @transform_4, window_bounds = array<i64: 1, 128>}, {transform_indices = @transform_5, window_bounds = array<i64: 8, 16, 128>}]} {
    %c0_i32 = arith.constant 0 : i32
    %0 = arith.cmpi eq, %arg1, %c0_i32 : i32
    %1 = arith.extui %0 : i1 to i32
    %c0_i32_0 = arith.constant 0 : i32
    %2 = arith.cmpi ne, %1, %c0_i32_0 : i32
    scf.if %2 {
      %c0_69 = arith.constant 0 : index
      %c0_70 = arith.constant 0 : index
      %117 = vector.load %arg3[%c0_69, %c0_70] : memref<16x128xbf16, #tpu.memory_space<vmem>>, vector<16x128xbf16>
      %c0_71 = arith.constant 0 : index
      %c0_72 = arith.constant 0 : index
      %118 = vector.load %arg8[%c0_71, %c0_72] : memref<16x128xbf16, #tpu.memory_space<vmem>>, vector<16x128xbf16>
      tpu.vector_store %arg8[%c0_71, %c0_72], %117 {strides = array<i32>} : memref<16x128xbf16, #tpu.memory_space<vmem>>, vector<16x128xbf16>,
    } else {
    }
    %c0 = arith.constant 0 : index
    %c0_1 = arith.constant 0 : index
    %c0_2 = arith.constant 0 : index
    %3 = vector.load %arg2[%c0, %c0_1, %c0_2] : memref<1x128x16xbf16, #tpu.memory_space<vmem>>, vector<1x128x16xbf16>
    %4 = vector.shape_cast %3 : vector<1x128x16xbf16> to vector<128x16xbf16>
    %c0_3 = arith.constant 0 : index
    %c0_4 = arith.constant 0 : index
    %5 = vector.load %arg4[%c0_3, %c0_4] : memref<16x128xbf16, #tpu.memory_space<vmem>>, vector<16x128xbf16>
    %cst = arith.constant dense<0.000000e+00> : vector<128x128xf32>
    %6 = tpu.matmul %4, %5, %cst {dimension_numbers = #tpu.dot_dimension_numbers<[1], [0], [0], [1], [0, 0, 1, 1], [], []>} : vector<128x16xbf16>, vector<16x128xbf16>, vector<128x128xf32> -> vector<128x128xf32>
    %c0_5 = arith.constant 0 : index
    %c0_6 = arith.constant 0 : index
    %7 = vector.load %arg6[%c0_5, %c0_6] : memref<1x128xf32, #tpu.memory_space<vmem>>, vector<1x128xf32>
    %8 = vector.broadcast %7 : vector<1x128xf32> to vector<128x128xf32>
    %9 = arith.addf %6, %8 : vector<128x128xf32>
    %c0_7 = arith.constant 0 : index
    %c0_8 = arith.constant 0 : index
    %10 = vector.load %arg9[%c0_7, %c0_8] : memref<128x128xf32, #tpu.memory_space<vmem>>, vector<128x128xf32>
    tpu.vector_store %arg9[%c0_7, %c0_8], %9 {strides = array<i32>} : memref<128x128xf32, #tpu.memory_space<vmem>>, vector<128x128xf32>,
    %c0_9 = arith.constant 0 : index
    %c0_10 = arith.constant 0 : index
    %11 = vector.load %arg8[%c0_9, %c0_10] : memref<16x128xbf16, #tpu.memory_space<vmem>>, vector<16x128xbf16>
    %c0_i32_11 = arith.constant 0 : i32
    %c16_i32 = arith.constant 16 : i32
    %12 = arith.muli %c0_i32_11, %c16_i32 : i32
    %13 = tpu.assume_multiple %12, 16 : i32
    %14 = arith.index_cast %13 : i32 to index
    %c0_12 = arith.constant 0 : index
    %15 = vector.load %arg9[%14, %c0_12] : memref<128x128xf32, #tpu.memory_space<vmem>>, vector<16x128xf32>
    %c0_13 = arith.constant 0 : index
    %c0_14 = arith.constant 0 : index
    %16 = vector.load %arg5[%c0_13, %c0_14] : memref<128x128xbf16, #tpu.memory_space<vmem>>, vector<128x128xbf16>
    %cst_15 = arith.constant dense<0.000000e+00> : vector<16x128xf32>
    %17 = tpu.matmul %11, %16, %cst_15 {dimension_numbers = #tpu.dot_dimension_numbers<[1], [0], [0], [1], [0, 0, 1, 1], [], []>} : vector<16x128xbf16>, vector<128x128xbf16>, vector<16x128xf32> -> vector<16x128xf32>
    %18 = arith.addf %15, %17 : vector<16x128xf32>
    %19 = math.tanh %18 : vector<16x128xf32>
    %20 = arith.index_cast %c0_i32_11 : i32 to index
    %c0_16 = arith.constant 0 : index
    %c0_17 = arith.constant 0 : index
    %21 = vector.load %arg7[%20, %c0_16, %c0_17] : memref<8x16x128xf32, #tpu.memory_space<vmem>>, vector<1x16x128xf32>
    %22 = vector.shape_cast %21 : vector<1x16x128xf32> to vector<16x128xf32>
    %23 = vector.shape_cast %19 : vector<16x128xf32> to vector<1x16x128xf32>
    tpu.vector_store %arg7[%20, %c0_16, %c0_17], %23 {strides = array<i32>} : memref<8x16x128xf32, #tpu.memory_space<vmem>>, vector<1x16x128xf32>,
    %24 = arith.truncf %19 : vector<16x128xf32> to vector<16x128xbf16>
    %c1_i32 = arith.constant 1 : i32
    %c16_i32_18 = arith.constant 16 : i32
    %25 = arith.muli %c1_i32, %c16_i32_18 : i32
    %26 = tpu.assume_multiple %25, 16 : i32
    %27 = arith.index_cast %26 : i32 to index
    %c0_19 = arith.constant 0 : index
    %28 = vector.load %arg9[%27, %c0_19] : memref<128x128xf32, #tpu.memory_space<vmem>>, vector<16x128xf32>
    %c0_20 = arith.constant 0 : index
    %c0_21 = arith.constant 0 : index
    %29 = vector.load %arg5[%c0_20, %c0_21] : memref<128x128xbf16, #tpu.memory_space<vmem>>, vector<128x128xbf16>
    %cst_22 = arith.constant dense<0.000000e+00> : vector<16x128xf32>
    %30 = tpu.matmul %24, %29, %cst_22 {dimension_numbers = #tpu.dot_dimension_numbers<[1], [0], [0], [1], [0, 0, 1, 1], [], []>} : vector<16x128xbf16>, vector<128x128xbf16>, vector<16x128xf32> -> vector<16x128xf32>
    %31 = arith.addf %28, %30 : vector<16x128xf32>
    %32 = math.tanh %31 : vector<16x128xf32>
    %33 = arith.index_cast %c1_i32 : i32 to index
    %c0_23 = arith.constant 0 : index
    %c0_24 = arith.constant 0 : index
    %34 = vector.load %arg7[%33, %c0_23, %c0_24] : memref<8x16x128xf32, #tpu.memory_space<vmem>>, vector<1x16x128xf32>
    %35 = vector.shape_cast %34 : vector<1x16x128xf32> to vector<16x128xf32>
    %36 = vector.shape_cast %32 : vector<16x128xf32> to vector<1x16x128xf32>
    tpu.vector_store %arg7[%33, %c0_23, %c0_24], %36 {strides = array<i32>} : memref<8x16x128xf32, #tpu.memory_space<vmem>>, vector<1x16x128xf32>,
    %37 = arith.truncf %32 : vector<16x128xf32> to vector<16x128xbf16>
    %c2_i32 = arith.constant 2 : i32
    %c16_i32_25 = arith.constant 16 : i32
    %38 = arith.muli %c2_i32, %c16_i32_25 : i32
    %39 = tpu.assume_multiple %38, 16 : i32
    %40 = arith.index_cast %39 : i32 to index
    %c0_26 = arith.constant 0 : index
    %41 = vector.load %arg9[%40, %c0_26] : memref<128x128xf32, #tpu.memory_space<vmem>>, vector<16x128xf32>
    %c0_27 = arith.constant 0 : index
    %c0_28 = arith.constant 0 : index
    %42 = vector.load %arg5[%c0_27, %c0_28] : memref<128x128xbf16, #tpu.memory_space<vmem>>, vector<128x128xbf16>
    %cst_29 = arith.constant dense<0.000000e+00> : vector<16x128xf32>
    %43 = tpu.matmul %37, %42, %cst_29 {dimension_numbers = #tpu.dot_dimension_numbers<[1], [0], [0], [1], [0, 0, 1, 1], [], []>} : vector<16x128xbf16>, vector<128x128xbf16>, vector<16x128xf32> -> vector<16x128xf32>
    %44 = arith.addf %41, %43 : vector<16x128xf32>
    %45 = math.tanh %44 : vector<16x128xf32>
    %46 = arith.index_cast %c2_i32 : i32 to index
    %c0_30 = arith.constant 0 : index
    %c0_31 = arith.constant 0 : index
    %47 = vector.load %arg7[%46, %c0_30, %c0_31] : memref<8x16x128xf32, #tpu.memory_space<vmem>>, vector<1x16x128xf32>
    %48 = vector.shape_cast %47 : vector<1x16x128xf32> to vector<16x128xf32>
    %49 = vector.shape_cast %45 : vector<16x128xf32> to vector<1x16x128xf32>
    tpu.vector_store %arg7[%46, %c0_30, %c0_31], %49 {strides = array<i32>} : memref<8x16x128xf32, #tpu.memory_space<vmem>>, vector<1x16x128xf32>,
    %50 = arith.truncf %45 : vector<16x128xf32> to vector<16x128xbf16>
    %c3_i32 = arith.constant 3 : i32
    %c16_i32_32 = arith.constant 16 : i32
    %51 = arith.muli %c3_i32, %c16_i32_32 : i32
    %52 = tpu.assume_multiple %51, 16 : i32
    %53 = arith.index_cast %52 : i32 to index
    %c0_33 = arith.constant 0 : index
    %54 = vector.load %arg9[%53, %c0_33] : memref<128x128xf32, #tpu.memory_space<vmem>>, vector<16x128xf32>
    %c0_34 = arith.constant 0 : index
    %c0_35 = arith.constant 0 : index
    %55 = vector.load %arg5[%c0_34, %c0_35] : memref<128x128xbf16, #tpu.memory_space<vmem>>, vector<128x128xbf16>
    %cst_36 = arith.constant dense<0.000000e+00> : vector<16x128xf32>
    %56 = tpu.matmul %50, %55, %cst_36 {dimension_numbers = #tpu.dot_dimension_numbers<[1], [0], [0], [1], [0, 0, 1, 1], [], []>} : vector<16x128xbf16>, vector<128x128xbf16>, vector<16x128xf32> -> vector<16x128xf32>
    %57 = arith.addf %54, %56 : vector<16x128xf32>
    %58 = math.tanh %57 : vector<16x128xf32>
    %59 = arith.index_cast %c3_i32 : i32 to index
    %c0_37 = arith.constant 0 : index
    %c0_38 = arith.constant 0 : index
    %60 = vector.load %arg7[%59, %c0_37, %c0_38] : memref<8x16x128xf32, #tpu.memory_space<vmem>>, vector<1x16x128xf32>
    %61 = vector.shape_cast %60 : vector<1x16x128xf32> to vector<16x128xf32>
    %62 = vector.shape_cast %58 : vector<16x128xf32> to vector<1x16x128xf32>
    tpu.vector_store %arg7[%59, %c0_37, %c0_38], %62 {strides = array<i32>} : memref<8x16x128xf32, #tpu.memory_space<vmem>>, vector<1x16x128xf32>,
    %63 = arith.truncf %58 : vector<16x128xf32> to vector<16x128xbf16>
    %c4_i32 = arith.constant 4 : i32
    %c16_i32_39 = arith.constant 16 : i32
    %64 = arith.muli %c4_i32, %c16_i32_39 : i32
    %65 = tpu.assume_multiple %64, 16 : i32
    %66 = arith.index_cast %65 : i32 to index
    %c0_40 = arith.constant 0 : index
    %67 = vector.load %arg9[%66, %c0_40] : memref<128x128xf32, #tpu.memory_space<vmem>>, vector<16x128xf32>
    %c0_41 = arith.constant 0 : index
    %c0_42 = arith.constant 0 : index
    %68 = vector.load %arg5[%c0_41, %c0_42] : memref<128x128xbf16, #tpu.memory_space<vmem>>, vector<128x128xbf16>
    %cst_43 = arith.constant dense<0.000000e+00> : vector<16x128xf32>
    %69 = tpu.matmul %63, %68, %cst_43 {dimension_numbers = #tpu.dot_dimension_numbers<[1], [0], [0], [1], [0, 0, 1, 1], [], []>} : vector<16x128xbf16>, vector<128x128xbf16>, vector<16x128xf32> -> vector<16x128xf32>
    %70 = arith.addf %67, %69 : vector<16x128xf32>
    %71 = math.tanh %70 : vector<16x128xf32>
    %72 = arith.index_cast %c4_i32 : i32 to index
    %c0_44 = arith.constant 0 : index
    %c0_45 = arith.constant 0 : index
    %73 = vector.load %arg7[%72, %c0_44, %c0_45] : memref<8x16x128xf32, #tpu.memory_space<vmem>>, vector<1x16x128xf32>
    %74 = vector.shape_cast %73 : vector<1x16x128xf32> to vector<16x128xf32>
    %75 = vector.shape_cast %71 : vector<16x128xf32> to vector<1x16x128xf32>
    tpu.vector_store %arg7[%72, %c0_44, %c0_45], %75 {strides = array<i32>} : memref<8x16x128xf32, #tpu.memory_space<vmem>>, vector<1x16x128xf32>,
    %76 = arith.truncf %71 : vector<16x128xf32> to vector<16x128xbf16>
    %c5_i32 = arith.constant 5 : i32
    %c16_i32_46 = arith.constant 16 : i32
    %77 = arith.muli %c5_i32, %c16_i32_46 : i32
    %78 = tpu.assume_multiple %77, 16 : i32
    %79 = arith.index_cast %78 : i32 to index
    %c0_47 = arith.constant 0 : index
    %80 = vector.load %arg9[%79, %c0_47] : memref<128x128xf32, #tpu.memory_space<vmem>>, vector<16x128xf32>
    %c0_48 = arith.constant 0 : index
    %c0_49 = arith.constant 0 : index
    %81 = vector.load %arg5[%c0_48, %c0_49] : memref<128x128xbf16, #tpu.memory_space<vmem>>, vector<128x128xbf16>
    %cst_50 = arith.constant dense<0.000000e+00> : vector<16x128xf32>
    %82 = tpu.matmul %76, %81, %cst_50 {dimension_numbers = #tpu.dot_dimension_numbers<[1], [0], [0], [1], [0, 0, 1, 1], [], []>} : vector<16x128xbf16>, vector<128x128xbf16>, vector<16x128xf32> -> vector<16x128xf32>
    %83 = arith.addf %80, %82 : vector<16x128xf32>
    %84 = math.tanh %83 : vector<16x128xf32>
    %85 = arith.index_cast %c5_i32 : i32 to index
    %c0_51 = arith.constant 0 : index
    %c0_52 = arith.constant 0 : index
    %86 = vector.load %arg7[%85, %c0_51, %c0_52] : memref<8x16x128xf32, #tpu.memory_space<vmem>>, vector<1x16x128xf32>
    %87 = vector.shape_cast %86 : vector<1x16x128xf32> to vector<16x128xf32>
    %88 = vector.shape_cast %84 : vector<16x128xf32> to vector<1x16x128xf32>
    tpu.vector_store %arg7[%85, %c0_51, %c0_52], %88 {strides = array<i32>} : memref<8x16x128xf32, #tpu.memory_space<vmem>>, vector<1x16x128xf32>,
    %89 = arith.truncf %84 : vector<16x128xf32> to vector<16x128xbf16>
    %c6_i32 = arith.constant 6 : i32
    %c16_i32_53 = arith.constant 16 : i32
    %90 = arith.muli %c6_i32, %c16_i32_53 : i32
    %91 = tpu.assume_multiple %90, 16 : i32
    %92 = arith.index_cast %91 : i32 to index
    %c0_54 = arith.constant 0 : index
    %93 = vector.load %arg9[%92, %c0_54] : memref<128x128xf32, #tpu.memory_space<vmem>>, vector<16x128xf32>
    %c0_55 = arith.constant 0 : index
    %c0_56 = arith.constant 0 : index
    %94 = vector.load %arg5[%c0_55, %c0_56] : memref<128x128xbf16, #tpu.memory_space<vmem>>, vector<128x128xbf16>
    %cst_57 = arith.constant dense<0.000000e+00> : vector<16x128xf32>
    %95 = tpu.matmul %89, %94, %cst_57 {dimension_numbers = #tpu.dot_dimension_numbers<[1], [0], [0], [1], [0, 0, 1, 1], [], []>} : vector<16x128xbf16>, vector<128x128xbf16>, vector<16x128xf32> -> vector<16x128xf32>
    %96 = arith.addf %93, %95 : vector<16x128xf32>
    %97 = math.tanh %96 : vector<16x128xf32>
    %98 = arith.index_cast %c6_i32 : i32 to index
    %c0_58 = arith.constant 0 : index
    %c0_59 = arith.constant 0 : index
    %99 = vector.load %arg7[%98, %c0_58, %c0_59] : memref<8x16x128xf32, #tpu.memory_space<vmem>>, vector<1x16x128xf32>
    %100 = vector.shape_cast %99 : vector<1x16x128xf32> to vector<16x128xf32>
    %101 = vector.shape_cast %97 : vector<16x128xf32> to vector<1x16x128xf32>
    tpu.vector_store %arg7[%98, %c0_58, %c0_59], %101 {strides = array<i32>} : memref<8x16x128xf32, #tpu.memory_space<vmem>>, vector<1x16x128xf32>,
    %102 = arith.truncf %97 : vector<16x128xf32> to vector<16x128xbf16>
    %c7_i32 = arith.constant 7 : i32
    %c16_i32_60 = arith.constant 16 : i32
    %103 = arith.muli %c7_i32, %c16_i32_60 : i32
    %104 = tpu.assume_multiple %103, 16 : i32
    %105 = arith.index_cast %104 : i32 to index
    %c0_61 = arith.constant 0 : index
    %106 = vector.load %arg9[%105, %c0_61] : memref<128x128xf32, #tpu.memory_space<vmem>>, vector<16x128xf32>
    %c0_62 = arith.constant 0 : index
    %c0_63 = arith.constant 0 : index
    %107 = vector.load %arg5[%c0_62, %c0_63] : memref<128x128xbf16, #tpu.memory_space<vmem>>, vector<128x128xbf16>
    %cst_64 = arith.constant dense<0.000000e+00> : vector<16x128xf32>
    %108 = tpu.matmul %102, %107, %cst_64 {dimension_numbers = #tpu.dot_dimension_numbers<[1], [0], [0], [1], [0, 0, 1, 1], [], []>} : vector<16x128xbf16>, vector<128x128xbf16>, vector<16x128xf32> -> vector<16x128xf32>
    %109 = arith.addf %106, %108 : vector<16x128xf32>
    %110 = math.tanh %109 : vector<16x128xf32>
    %111 = arith.index_cast %c7_i32 : i32 to index
    %c0_65 = arith.constant 0 : index
    %c0_66 = arith.constant 0 : index
    %112 = vector.load %arg7[%111, %c0_65, %c0_66] : memref<8x16x128xf32, #tpu.memory_space<vmem>>, vector<1x16x128xf32>
    %113 = vector.shape_cast %112 : vector<1x16x128xf32> to vector<16x128xf32>
    %114 = vector.shape_cast %110 : vector<16x128xf32> to vector<1x16x128xf32>
    tpu.vector_store %arg7[%111, %c0_65, %c0_66], %114 {strides = array<i32>} : memref<8x16x128xf32, #tpu.memory_space<vmem>>, vector<1x16x128xf32>,
    %115 = arith.truncf %110 : vector<16x128xf32> to vector<16x128xbf16>
    %c8_i32 = arith.constant 8 : i32
    %c0_67 = arith.constant 0 : index
    %c0_68 = arith.constant 0 : index
    %116 = vector.load %arg8[%c0_67, %c0_68] : memref<16x128xbf16, #tpu.memory_space<vmem>>, vector<16x128xbf16>
    tpu.vector_store %arg8[%c0_67, %c0_68], %115 {strides = array<i32>} : memref<16x128xbf16, #tpu.memory_space<vmem>>, vector<16x128xbf16>,
    return
  }
  func.func @transform_0(%arg0: i32, %arg1: i32) -> (i32, i32, i32) {
    %c0_i32 = arith.constant 0 : i32
    %c0_i32_0 = arith.constant 0 : i32
    return %arg0, %arg1, %c0_i32 : i32, i32, i32
  }
  func.func @transform_1(%arg0: i32, %arg1: i32) -> (i32, i32) {
    %c0_i32 = arith.constant 0 : i32
    %c0_i32_0 = arith.constant 0 : i32
    return %arg0, %c0_i32 : i32, i32
  }
  func.func @transform_2(%arg0: i32, %arg1: i32) -> (i32, i32) {
    %c0_i32 = arith.constant 0 : i32
    %c0_i32_0 = arith.constant 0 : i32
    %c0_i32_1 = arith.constant 0 : i32
    return %c0_i32, %c0_i32_0 : i32, i32
  }
  func.func @transform_3(%arg0: i32, %arg1: i32) -> (i32, i32) {
    %c0_i32 = arith.constant 0 : i32
    %c0_i32_0 = arith.constant 0 : i32
    %c0_i32_1 = arith.constant 0 : i32
    return %c0_i32, %c0_i32_0 : i32, i32
  }
  func.func @transform_4(%arg0: i32, %arg1: i32) -> (i32, i32) {
    %c0_i32 = arith.constant 0 : i32
    %c0_i32_0 = arith.constant 0 : i32
    %c0_i32_1 = arith.constant 0 : i32
    return %c0_i32, %c0_i32_0 : i32, i32
  }
  func.func @transform_5(%arg0: i32, %arg1: i32) -> (i32, i32, i32) {
    %c0_i32 = arith.constant 0 : i32
    %c0_i32_0 = arith.constant 0 : i32
    return %arg1, %arg0, %c0_i32 : i32, i32, i32
  }
}

</mosaic_0001>

<llo_original>
// kernel: tpu_custom_call.1
$region0: #{tpu_custom_call.1}
  #allocation0 [shape = 'u32[]', space=smem, size = 0x4, offset = 0x4, fixed_abs, tag = 'smem constant byte address 0x4 - core index']
  #allocation1 [shape = 'u32[144,128]{1,0:T(1,128)}', space=vmem, size = 0x12000, scoped, tag = 'internal scratch']
  #allocation2 [shape = 'bf16[16,128]{1,0:T(8,128)(2,1)}', space=vmem, size = 0x1000, scoped, tag = 'scratch operand']
  #allocation3 [shape = 'f32[128,128]{1,0:T(8,128)}', space=vmem, size = 0x10000, scoped, tag = 'scratch operand']
  %s0 = inlined_call_operand.vmem [shape: bf16[1,128,16], index: 0, kind: input, shape index: {}]
  %s1 = inlined_call_operand.vmem [shape: bf16[16,128], index: 1, kind: input, shape index: {}]
  %s2 = inlined_call_operand.hbm [shape: bf16[16,128], index: 2, kind: input, shape index: {}]
  %s3 = inlined_call_operand.vmem [shape: bf16[128,128], index: 3, kind: input, shape index: {}]
  %s4 = inlined_call_operand.vmem [shape: f32[1,128], index: 4, kind: input, shape index: {}]
  %s5 = inlined_call_operand.hbm [shape: f32[8,16,128], index: 5, kind: output, shape index: {}]
  %s6 = sld [smem:[#allocation0]]
  $region38: #{tpu_custom_call.1} parent=0
    _
  %s8 = ssub.s32 1, %s6
  %s9 = scalar_select 0, %s8, %s6
  $region1: #{tpu_custom_call.1} parent=0
    #allocation4 [shape = 'u8[4096]{0}', space=vmem, size = 0x1000, scoped, tag = 'input window, operand 2, single buffered']
    #allocation5 [shape = 's32[1]{0}', space=sflag, size = 0x4, scoped, tag = 'scoped memory for tpu_custom_call.1']
    #allocation6 [shape = 's32[1]{0}', space=sflag, size = 0x4, scoped, tag = 'scoped memory for tpu_custom_call.1']
    #allocation7 [shape = 'u8[65536]{0}', space=vmem, size = 0x10000, scoped, tag = 'output window, operand 0, single buffered']
    %10 = vsyncpa [#allocation5], 0
    %11 = vsyncpa [#allocation6], 0
    // Predicated region
    $region2: #{tpu_custom_call.1} parent=1 // pred_check
      _
    $region3: #{tpu_custom_call.1} parent=1 // pred_check_branch
      %13 = sbr.rel (0) target = $region5
    $region4: #{tpu_custom_call.1} parent=1 // pred_region
      _
    $region5: #{tpu_custom_call.1} parent=1 // pred_fallthru
      _
    // Predicated region
    $region6: #{tpu_custom_call.1} parent=1 // pred_check
      _
    $region7: #{tpu_custom_call.1} parent=1 // pred_check_branch
      %15 = sbr.rel (0) target = $region9
    $region8: #{tpu_custom_call.1} parent=1 // pred_region
      _
    $region9: #{tpu_custom_call.1} parent=1 // pred_fallthru
      _
    // Predicated region
    $region10: #{tpu_custom_call.1} parent=1 // pred_check
      _
    $region11: #{tpu_custom_call.1} parent=1 // pred_check_branch
      %17 = sbr.rel (0) target = $region13
    $region12: #{tpu_custom_call.1} parent=1 // pred_region
      %s19 = ssub.s32 128, 128
      %20 = vsyncadd [#allocation5], %s19
      %s21 = sshll.u32 [#allocation4], 4
      %s22 = int_to_ptr.vmem [resolvable:$true] %s21
      %27 = dma.hbm_to_vmem [thread:$0]  %s2, 128, %s22, [#allocation5], 64, 64, 4
    $region13: #{tpu_custom_call.1} parent=1 // pred_fallthru
      _
    // Predicated region
    $region14: #{tpu_custom_call.1} parent=1 // pred_check
      _
    $region15: #{tpu_custom_call.1} parent=1 // pred_check_branch
      %29 = sbr.rel (0) target = $region17
    $region16: #{tpu_custom_call.1} parent=1 // pred_region
      _
    $region17: #{tpu_custom_call.1} parent=1 // pred_fallthru
      _
    // Predicated region
    $region18: #{tpu_custom_call.1} parent=1 // pred_check
      _
    $region19: #{tpu_custom_call.1} parent=1 // pred_check_branch
      %31 = sbr.rel (0) target = $region21
    $region20: #{tpu_custom_call.1} parent=1 // pred_region
      _
    $region21: #{tpu_custom_call.1} parent=1 // pred_fallthru
      _
    // Predicated region
    $region22: #{tpu_custom_call.1} parent=1 // pred_check
      _
    $region23: #{tpu_custom_call.1} parent=1 // pred_check_branch
      %33 = sbr.rel (0) target = $region25
    $region24: #{tpu_custom_call.1} parent=1 // pred_region
      %34 = dma.done [#allocation5], 128
    $region25: #{tpu_custom_call.1} parent=1 // pred_fallthru
      _
    %p36 = scmp.eq.s32.totalorder 0, 0
    // Predicated region
    $region26: #{tpu_custom_call.1} parent=1 // pred_check
      %p37 = pneg %p36
    $region27: #{tpu_custom_call.1} parent=1 // pred_check_branch
      %39 = sbr.rel (%p37) target = $region29
    $region28: #{tpu_custom_call.1} parent=1 // pred_region
      %v40 = vld [vmem:[%s1] sm:$0xf]
      %v41 = vld [vmem:[%s1 + $0x4] sm:$0xf]
      %42 = vst [vmem:[#allocation2] sm:$0xf] %v40
      %43 = vst [vmem:[#allocation2 + $0x4] sm:$0xf] %v41
    $region29: #{tpu_custom_call.1} parent=1 // pred_fallthru
      _
    %v44 = vld [vmem:[%s0] sm:$0xf]
    %v45 = vld [vmem:[%s0 + $0x4] sm:$0xf]
    %v46 = vld [vmem:[%s0 + $0x8] sm:$0xf]
    %v47 = vld [vmem:[%s0 + $0xc] sm:$0xf]
    %v48 = vld [vmem:[%s0 + $0x10] sm:$0xf]
    %v49 = vld [vmem:[%s0 + $0x14] sm:$0xf]
    %v50 = vld [vmem:[%s0 + $0x18] sm:$0xf]
    %v51 = vld [vmem:[%s0 + $0x1c] sm:$0xf]
    %v52 = vld [vmem:[%s0 + $0x20] sm:$0xf]
    %v53 = vld [vmem:[%s0 + $0x24] sm:$0xf]
    %v54 = vld [vmem:[%s0 + $0x28] sm:$0xf]
    %v55 = vld [vmem:[%s0 + $0x2c] sm:$0xf]
    %v56 = vld [vmem:[%s0 + $0x30] sm:$0xf]
    %v57 = vld [vmem:[%s0 + $0x34] sm:$0xf]
    %v58 = vld [vmem:[%s0 + $0x38] sm:$0xf]
    %v59 = vld [vmem:[%s0 + $0x3c] sm:$0xf]
    %v60 = vld [vmem:[#allocation4] sm:$0xf]
    %v61 = vld [vmem:[#allocation4 + $0x4] sm:$0xf]
    %v62 = vld [vmem:[%s4] sm:$0x1]
    %v64 = vlaneseq
    %v65 = vshrl.u32 %v64, 7
    %v66 = vsub.s32 0, %v65
    %v67 = vrot.slane %v62, %v66
    %v85 = vunpack.c.l.b16 %v44
    %v86 = vunpack.c.l.b16 %v45
    %v87 = vunpack.c.l.b16 %v46
    %v88 = vunpack.c.l.b16 %v47
    %v89 = vunpack.c.l.b16 %v48
    %v90 = vunpack.c.l.b16 %v49
    %v91 = vunpack.c.l.b16 %v50
    %v92 = vunpack.c.l.b16 %v51
    %v93 = vunpack.c.l.b16 %v52
    %v94 = vunpack.c.l.b16 %v53
    %v95 = vunpack.c.l.b16 %v54
    %v96 = vunpack.c.l.b16 %v55
    %v97 = vunpack.c.l.b16 %v56
    %v98 = vunpack.c.l.b16 %v57
    %v99 = vunpack.c.l.b16 %v58
    %v100 = vunpack.c.l.b16 %v59
    %v101 = vpack.c.b16 %v86, %v85
    %v102 = vpack.c.b16 %v88, %v87
    %v103 = vpack.c.b16 %v90, %v89
    %v104 = vpack.c.b16 %v92, %v91
    %v105 = vpack.c.b16 %v94, %v93
    %v106 = vpack.c.b16 %v96, %v95
    %v107 = vpack.c.b16 %v98, %v97
    %v108 = vpack.c.b16 %v100, %v99
    %v111 = vunpack.c.l.b16 %v60
    %v112 = vunpack.c.l.b16 %v61
    %v113 = vpack.c.b16 %v112, %v111
    %vm115 = vcmask 130048
    %v117 = vsel %vm115, %v101, 0
    %v120 = vsel %vm115, %v102, 0
    %v123 = vsel %vm115, %v103, 0
    %v126 = vsel %vm115, %v104, 0
    %v129 = vsel %vm115, %v105, 0
    %v132 = vsel %vm115, %v106, 0
    %v135 = vsel %vm115, %v107, 0
    %v138 = vsel %vm115, %v108, 0
    %140 = vmatprep.subr.bf16.mxu0 0
    %141 = vmatpush1.bf16.msra.mxu0 0
    %142 = vmatprep.subr.bf16.mxu0 0
    %143 = vmatpush1.bf16.msra.mxu0 0
    %144 = vmatprep.subr.bf16.mxu0 0
    %145 = vmatpush1.bf16.msra.mxu0 0
    %146 = vmatprep.subr.bf16.mxu0 0
    %147 = vmatpush1.bf16.msra.mxu0 0
    %148 = vmatprep.subr.bf16.mxu0 0
    %149 = vmatpush1.bf16.msra.mxu0 0
    %150 = vmatprep.subr.bf16.mxu0 0
    %151 = vmatpush1.bf16.msra.mxu0 0
    %152 = vmatprep.subr.bf16.mxu0 0
    %153 = vmatpush1.bf16.msra.mxu0 0
    %154 = vmatprep.subr.bf16.mxu0 0
    %155 = vmatpush1.bf16.msra.mxu0 %v113
    %156 = vmatprep.subr.bf16.mxu0 0
    %157 = vmatpush2.bf16.msra.mxu0 0
    %158 = vmatprep.subr.bf16.mxu0 0
    %159 = vmatpush2.bf16.msra.mxu0 0
    %160 = vmatprep.subr.bf16.mxu0 0
    %161 = vmatpush2.bf16.msra.mxu0 0
    %162 = vmatprep.subr.bf16.mxu0 0
    %163 = vmatpush2.bf16.msra.mxu0 0
    %164 = vmatprep.subr.bf16.mxu0 0
    %165 = vmatpush2.bf16.msra.mxu0 0
    %166 = vmatprep.subr.bf16.mxu0 0
    %167 = vmatpush2.bf16.msra.mxu0 0
    %168 = vmatprep.subr.bf16.mxu0 0
    %169 = vmatpush2.bf16.msra.mxu0 0
    %170 = vmatprep.subr.bf16.mxu0 0
    %171 = vmatpush2.bf16.msra.mxu0 0
    %172 = vmatprep.mubr.bf16.mxu0 0
    %173 = vmatmul.mubr.bf16.gmra.mxu0 %v117
    %v174 = vpop.f32.mrf.mxu0
    %v175 = vadd.f32 %v67, %v174
    %v176 = vpop.f32.mrf.mxu0
    %v177 = vpop.f32.mrf.mxu0
    %v178 = vadd.f32 %v67, %v177
    %v179 = vpop.f32.mrf.mxu0
    %180 = vmatprep.mubr.bf16.mxu0 0
    %181 = vmatmul.mubr.bf16.gmra.mxu0 %v120
    %v182 = vpop.f32.mrf.mxu0
    %v183 = vadd.f32 %v67, %v182
    %v184 = vpop.f32.mrf.mxu0
    %v185 = vpop.f32.mrf.mxu0
    %v186 = vadd.f32 %v67, %v185
    %v187 = vpop.f32.mrf.mxu0
    %188 = vmatprep.mubr.bf16.mxu0 0
    %189 = vmatmul.mubr.bf16.gmra.mxu0 %v123
    %v190 = vpop.f32.mrf.mxu0
    %v191 = vadd.f32 %v67, %v190
    %v192 = vpop.f32.mrf.mxu0
    %v193 = vpop.f32.mrf.mxu0
    %v194 = vadd.f32 %v67, %v193
    %v195 = vpop.f32.mrf.mxu0
    %196 = vmatprep.mubr.bf16.mxu0 0
    %197 = vmatmul.mubr.bf16.gmra.mxu0 %v126
    %v198 = vpop.f32.mrf.mxu0
    %v199 = vadd.f32 %v67, %v198
    %v200 = vpop.f32.mrf.mxu0
    %v201 = vpop.f32.mrf.mxu0
    %v202 = vadd.f32 %v67, %v201
    %v203 = vpop.f32.mrf.mxu0
    %204 = vmatprep.mubr.bf16.mxu0 0
    %205 = vmatmul.mubr.bf16.gmra.mxu0 %v129
    %v206 = vpop.f32.mrf.mxu0
    %v207 = vadd.f32 %v67, %v206
    %v208 = vpop.f32.mrf.mxu0
    %v209 = vpop.f32.mrf.mxu0
    %v210 = vadd.f32 %v67, %v209
    %v211 = vpop.f32.mrf.mxu0
    %212 = vmatprep.mubr.bf16.mxu0 0
    %213 = vmatmul.mubr.bf16.gmra.mxu0 %v132
    %v214 = vpop.f32.mrf.mxu0
    %v215 = vadd.f32 %v67, %v214
    %v216 = vpop.f32.mrf.mxu0
    %v217 = vpop.f32.mrf.mxu0
    %v218 = vadd.f32 %v67, %v217
    %v219 = vpop.f32.mrf.mxu0
    %220 = vmatprep.mubr.bf16.mxu0 0
    %221 = vmatmul.mubr.bf16.gmra.mxu0 %v135
    %v222 = vpop.f32.mrf.mxu0
    %v223 = vadd.f32 %v67, %v222
    %v224 = vpop.f32.mrf.mxu0
    %v225 = vpop.f32.mrf.mxu0
    %v226 = vadd.f32 %v67, %v225
    %v227 = vpop.f32.mrf.mxu0
    %228 = vmatprep.mubr.bf16.mxu0 0
    %229 = vmatmul.mubr.bf16.gmra.mxu0 %v138
    %v230 = vpop.f32.mrf.mxu0
    %v231 = vadd.f32 %v67, %v230
    %v232 = vpop.f32.mrf.mxu0
    %v233 = vpop.f32.mrf.mxu0
    %v234 = vadd.f32 %v67, %v233
    %v235 = vpop.f32.mrf.mxu0
    %236 = vdwg.mxu0
    %237 = vst [vmem:[#allocation3] sm:$0xff] %v175
    %238 = vst [vmem:[#allocation3 + $0x8] sm:$0xff] %v178
    %239 = vst [vmem:[#allocation3 + $0x10] sm:$0xff] %v183
    %240 = vst [vmem:[#allocation3 + $0x18] sm:$0xff] %v186
    %241 = vst [vmem:[#allocation3 + $0x20] sm:$0xff] %v191
    %242 = vst [vmem:[#allocation3 + $0x28] sm:$0xff] %v194
    %243 = vst [vmem:[#allocation3 + $0x30] sm:$0xff] %v199
    %244 = vst [vmem:[#allocation3 + $0x38] sm:$0xff] %v202
    %245 = vst [vmem:[#allocation3 + $0x40] sm:$0xff] %v207
    %246 = vst [vmem:[#allocation3 + $0x48] sm:$0xff] %v210
    %247 = vst [vmem:[#allocation3 + $0x50] sm:$0xff] %v215
    %248 = vst [vmem:[#allocation3 + $0x58] sm:$0xff] %v218
    %249 = vst [vmem:[#allocation3 + $0x60] sm:$0xff] %v223
    %250 = vst [vmem:[#allocation3 + $0x68] sm:$0xff] %v226
    %251 = vst [vmem:[#allocation3 + $0x70] sm:$0xff] %v231
    %252 = vst [vmem:[#allocation3 + $0x78] sm:$0xff] %v234
    %v253 = vld [vmem:[#allocation2] sm:$0xf]
    %v254 = vld [vmem:[#allocation2 + $0x4] sm:$0xf]
    %v255 = vld [vmem:[#allocation3] sm:$0xff]
    %v256 = vld [vmem:[#allocation3 + $0x8] sm:$0xff]
    %v257 = vld [vmem:[%s3] sm:$0xf]
    %v258 = vld [vmem:[%s3 + $0x4] sm:$0xf]
    %v259 = vld [vmem:[%s3 + $0x8] sm:$0xf]
    %v260 = vld [vmem:[%s3 + $0xc] sm:$0xf]
    %v261 = vld [vmem:[%s3 + $0x10] sm:$0xf]
    %v262 = vld [vmem:[%s3 + $0x14] sm:$0xf]
    %v263 = vld [vmem:[%s3 + $0x18] sm:$0xf]
    %v264 = vld [vmem:[%s3 + $0x1c] sm:$0xf]
    %v265 = vld [vmem:[%s3 + $0x20] sm:$0xf]
    %v266 = vld [vmem:[%s3 + $0x24] sm:$0xf]
    %v267 = vld [vmem:[%s3 + $0x28] sm:$0xf]
    %v268 = vld [vmem:[%s3 + $0x2c] sm:$0xf]
    %v269 = vld [vmem:[%s3 + $0x30] sm:$0xf]
    %v270 = vld [vmem:[%s3 + $0x34] sm:$0xf]
    %v271 = vld [vmem:[%s3 + $0x38] sm:$0xf]
    %v272 = vld [vmem:[%s3 + $0x3c] sm:$0xf]
    %v275 = vunpack.c.l.b16 %v253
    %v276 = vunpack.c.l.b16 %v254
    %v277 = vpack.c.b16 %v276, %v275
    %v295 = vunpack.c.l.b16 %v257
    %v296 = vunpack.c.l.b16 %v258
    %v297 = vunpack.c.l.b16 %v259
    %v298 = vunpack.c.l.b16 %v260
    %v299 = vunpack.c.l.b16 %v261
    %v300 = vunpack.c.l.b16 %v262
    %v301 = vunpack.c.l.b16 %v263
    %v302 = vunpack.c.l.b16 %v264
    %v303 = vunpack.c.l.b16 %v265
    %v304 = vunpack.c.l.b16 %v266
    %v305 = vunpack.c.l.b16 %v267
    %v306 = vunpack.c.l.b16 %v268
    %v307 = vunpack.c.l.b16 %v269
    %v308 = vunpack.c.l.b16 %v270
    %v309 = vunpack.c.l.b16 %v271
    %v310 = vunpack.c.l.b16 %v272
    %v311 = vpack.c.b16 %v296, %v295
    %v312 = vpack.c.b16 %v298, %v297
    %v313 = vpack.c.b16 %v300, %v299
    %v314 = vpack.c.b16 %v302, %v301
    %v315 = vpack.c.b16 %v304, %v303
    %v316 = vpack.c.b16 %v306, %v305
    %v317 = vpack.c.b16 %v308, %v307
    %v318 = vpack.c.b16 %v310, %v309
    %327 = vmatprep.subr.bf16.mxu0 0
    %328 = vmatpush1.bf16.msra.mxu0 %v318
    %329 = vmatprep.subr.bf16.mxu0 0
    %330 = vmatpush1.bf16.msra.mxu0 %v317
    %331 = vmatprep.subr.bf16.mxu0 0
    %332 = vmatpush1.bf16.msra.mxu0 %v316
    %333 = vmatprep.subr.bf16.mxu0 0
    %334 = vmatpush1.bf16.msra.mxu0 %v315
    %335 = vmatprep.subr.bf16.mxu0 0
    %336 = vmatpush1.bf16.msra.mxu0 %v314
    %337 = vmatprep.subr.bf16.mxu0 0
    %338 = vmatpush1.bf16.msra.mxu0 %v313
    %339 = vmatprep.subr.bf16.mxu0 0
    %340 = vmatpush1.bf16.msra.mxu0 %v312
    %341 = vmatprep.subr.bf16.mxu0 0
    %342 = vmatpush1.bf16.msra.mxu0 %v311
    %343 = vmatprep.subr.bf16.mxu0 0
    %344 = vmatpush2.bf16.msra.mxu0 0
    %345 = vmatprep.subr.bf16.mxu0 0
    %346 = vmatpush2.bf16.msra.mxu0 0
    %347 = vmatprep.subr.bf16.mxu0 0
    %348 = vmatpush2.bf16.msra.mxu0 0
    %349 = vmatprep.subr.bf16.mxu0 0
    %350 = vmatpush2.bf16.msra.mxu0 0
    %351 = vmatprep.subr.bf16.mxu0 0
    %352 = vmatpush2.bf16.msra.mxu0 0
    %353 = vmatprep.subr.bf16.mxu0 0
    %354 = vmatpush2.bf16.msra.mxu0 0
    %355 = vmatprep.subr.bf16.mxu0 0
    %356 = vmatpush2.bf16.msra.mxu0 0
    %357 = vmatprep.subr.bf16.mxu0 0
    %358 = vmatpush2.bf16.msra.mxu0 0
    %359 = vmatprep.mubr.bf16.mxu0 0
    %360 = vmatmul.mubr.bf16.gmra.mxu0 %v277
    %v361 = vpop.f32.mrf.mxu0
    %v362 = vadd.f32 0.0, %v361
    %v363 = vpop.f32.mrf.mxu0
    %v364 = vpop.f32.mrf.mxu0
    %v365 = vadd.f32 0.0, %v364
    %v366 = vpop.f32.mrf.mxu0
    %367 = vdwg.mxu0
    %v368 = vadd.f32 %v255, %v362
    %v369 = vadd.f32 %v256, %v365
    %v370 = vtanh.pop %v368
    %v371 = vtanh.pop %v369
    %372 = vst [vmem:[#allocation7] sm:$0xff] %v370
    %373 = vst [vmem:[#allocation7 + $0x8] sm:$0xff] %v371
    %v374 = vpack.c.bf16 %v371, %v370
    %s375 = scalar_lea.vmem [#allocation3], 16
    %v376 = vld [vmem:[%s375] sm:$0xff]
    %v377 = vld [vmem:[%s375 + $0x8] sm:$0xff]
    %v378 = vld [vmem:[%s3] sm:$0xf]
    %v379 = vld [vmem:[%s3 + $0x4] sm:$0xf]
    %v380 = vld [vmem:[%s3 + $0x8] sm:$0xf]
    %v381 = vld [vmem:[%s3 + $0xc] sm:$0xf]
    %v382 = vld [vmem:[%s3 + $0x10] sm:$0xf]
    %v383 = vld [vmem:[%s3 + $0x14] sm:$0xf]
    %v384 = vld [vmem:[%s3 + $0x18] sm:$0xf]
    %v385 = vld [vmem:[%s3 + $0x1c] sm:$0xf]
    %v386 = vld [vmem:[%s3 + $0x20] sm:$0xf]
    %v387 = vld [vmem:[%s3 + $0x24] sm:$0xf]
    %v388 = vld [vmem:[%s3 + $0x28] sm:$0xf]
    %v389 = vld [vmem:[%s3 + $0x2c] sm:$0xf]
    %v390 = vld [vmem:[%s3 + $0x30] sm:$0xf]
    %v391 = vld [vmem:[%s3 + $0x34] sm:$0xf]
    %v392 = vld [vmem:[%s3 + $0x38] sm:$0xf]
    %v393 = vld [vmem:[%s3 + $0x3c] sm:$0xf]
    %v410 = vunpack.c.l.b16 %v378
    %v411 = vunpack.c.l.b16 %v379
    %v412 = vunpack.c.l.b16 %v380
    %v413 = vunpack.c.l.b16 %v381
    %v414 = vunpack.c.l.b16 %v382
    %v415 = vunpack.c.l.b16 %v383
    %v416 = vunpack.c.l.b16 %v384
    %v417 = vunpack.c.l.b16 %v385
    %v418 = vunpack.c.l.b16 %v386
    %v419 = vunpack.c.l.b16 %v387
    %v420 = vunpack.c.l.b16 %v388
    %v421 = vunpack.c.l.b16 %v389
    %v422 = vunpack.c.l.b16 %v390
    %v423 = vunpack.c.l.b16 %v391
    %v424 = vunpack.c.l.b16 %v392
    %v425 = vunpack.c.l.b16 %v393
    %v426 = vpack.c.b16 %v411, %v410
    %v427 = vpack.c.b16 %v413, %v412
    %v428 = vpack.c.b16 %v415, %v414
    %v429 = vpack.c.b16 %v417, %v416
    %v430 = vpack.c.b16 %v419, %v418
    %v431 = vpack.c.b16 %v421, %v420
    %v432 = vpack.c.b16 %v423, %v422
    %v433 = vpack.c.b16 %v425, %v424
    %442 = vmatprep.subr.bf16.mxu0 0
    %443 = vmatpush1.bf16.msra.mxu0 %v433
    %444 = vmatprep.subr.bf16.mxu0 0
    %445 = vmatpush1.bf16.msra.mxu0 %v432
    %446 = vmatprep.subr.bf16.mxu0 0
    %447 = vmatpush1.bf16.msra.mxu0 %v431
    %448 = vmatprep.subr.bf16.mxu0 0
    %449 = vmatpush1.bf16.msra.mxu0 %v430
    %450 = vmatprep.subr.bf16.mxu0 0
    %451 = vmatpush1.bf16.msra.mxu0 %v429
    %452 = vmatprep.subr.bf16.mxu0 0
    %453 = vmatpush1.bf16.msra.mxu0 %v428
    %454 = vmatprep.subr.bf16.mxu0 0
    %455 = vmatpush1.bf16.msra.mxu0 %v427
    %456 = vmatprep.subr.bf16.mxu0 0
    %457 = vmatpush1.bf16.msra.mxu0 %v426
    %458 = vmatprep.subr.bf16.mxu0 0
    %459 = vmatpush2.bf16.msra.mxu0 0
    %460 = vmatprep.subr.bf16.mxu0 0
    %461 = vmatpush2.bf16.msra.mxu0 0
    %462 = vmatprep.subr.bf16.mxu0 0
    %463 = vmatpush2.bf16.msra.mxu0 0
    %464 = vmatprep.subr.bf16.mxu0 0
    %465 = vmatpush2.bf16.msra.mxu0 0
    %466 = vmatprep.subr.bf16.mxu0 0
    %467 = vmatpush2.bf16.msra.mxu0 0
    %468 = vmatprep.subr.bf16.mxu0 0
    %469 = vmatpush2.bf16.msra.mxu0 0
    %470 = vmatprep.subr.bf16.mxu0 0
    %471 = vmatpush2.bf16.msra.mxu0 0
    %472 = vmatprep.subr.bf16.mxu0 0
    %473 = vmatpush2.bf16.msra.mxu0 0
    %474 = vmatprep.mubr.bf16.mxu0 0
    %475 = vmatmul.mubr.bf16.gmra.mxu0 %v374
    %v476 = vpop.f32.mrf.mxu0
    %v477 = vadd.f32 0.0, %v476
    %v478 = vpop.f32.mrf.mxu0
    %v479 = vpop.f32.mrf.mxu0
    %v480 = vadd.f32 0.0, %v479
    %v481 = vpop.f32.mrf.mxu0
    %482 = vdwg.mxu0
    %v483 = vadd.f32 %v376, %v477
    %v484 = vadd.f32 %v377, %v480
    %v485 = vtanh.pop %v483
    %v486 = vtanh.pop %v484
    %s487 = scalar_lea.vmem [#allocation7], 16
    %488 = vst [vmem:[%s487] sm:$0xff] %v485
    %489 = vst [vmem:[%s487 + $0x8] sm:$0xff] %v486
    %v490 = vpack.c.bf16 %v486, %v485
    %s491 = scalar_lea.vmem [#allocation3], 32
    %v492 = vld [vmem:[%s491] sm:$0xff]
    %v493 = vld [vmem:[%s491 + $0x8] sm:$0xff]
    %v494 = vld [vmem:[%s3] sm:$0xf]
    %v495 = vld [vmem:[%s3 + $0x4] sm:$0xf]
    %v496 = vld [vmem:[%s3 + $0x8] sm:$0xf]
    %v497 = vld [vmem:[%s3 + $0xc] sm:$0xf]
    %v498 = vld [vmem:[%s3 + $0x10] sm:$0xf]
    %v499 = vld [vmem:[%s3 + $0x14] sm:$0xf]
    %v500 = vld [vmem:[%s3 + $0x18] sm:$0xf]
    %v501 = vld [vmem:[%s3 + $0x1c] sm:$0xf]
    %v502 = vld [vmem:[%s3 + $0x20] sm:$0xf]
    %v503 = vld [vmem:[%s3 + $0x24] sm:$0xf]
    %v504 = vld [vmem:[%s3 + $0x28] sm:$0xf]
    %v505 = vld [vmem:[%s3 + $0x2c] sm:$0xf]
    %v506 = vld [vmem:[%s3 + $0x30] sm:$0xf]
    %v507 = vld [vmem:[%s3 + $0x34] sm:$0xf]
    %v508 = vld [vmem:[%s3 + $0x38] sm:$0xf]
    %v509 = vld [vmem:[%s3 + $0x3c] sm:$0xf]
    %v526 = vunpack.c.l.b16 %v494
    %v527 = vunpack.c.l.b16 %v495
    %v528 = vunpack.c.l.b16 %v496
    %v529 = vunpack.c.l.b16 %v497
    %v530 = vunpack.c.l.b16 %v498
    %v531 = vunpack.c.l.b16 %v499
    %v532 = vunpack.c.l.b16 %v500
    %v533 = vunpack.c.l.b16 %v501
    %v534 = vunpack.c.l.b16 %v502
    %v535 = vunpack.c.l.b16 %v503
    %v536 = vunpack.c.l.b16 %v504
    %v537 = vunpack.c.l.b16 %v505
    %v538 = vunpack.c.l.b16 %v506
    %v539 = vunpack.c.l.b16 %v507
    %v540 = vunpack.c.l.b16 %v508
    %v541 = vunpack.c.l.b16 %v509
    %v542 = vpack.c.b16 %v527, %v526
    %v543 = vpack.c.b16 %v529, %v528
    %v544 = vpack.c.b16 %v531, %v530
    %v545 = vpack.c.b16 %v533, %v532
    %v546 = vpack.c.b16 %v535, %v534
    %v547 = vpack.c.b16 %v537, %v536
    %v548 = vpack.c.b16 %v539, %v538
    %v549 = vpack.c.b16 %v541, %v540
    %558 = vmatprep.subr.bf16.mxu0 0
    %559 = vmatpush1.bf16.msra.mxu0 %v549
    %560 = vmatprep.subr.bf16.mxu0 0
    %561 = vmatpush1.bf16.msra.mxu0 %v548
    %562 = vmatprep.subr.bf16.mxu0 0
    %563 = vmatpush1.bf16.msra.mxu0 %v547
    %564 = vmatprep.subr.bf16.mxu0 0
    %565 = vmatpush1.bf16.msra.mxu0 %v546
    %566 = vmatprep.subr.bf16.mxu0 0
    %567 = vmatpush1.bf16.msra.mxu0 %v545
    %568 = vmatprep.subr.bf16.mxu0 0
    %569 = vmatpush1.bf16.msra.mxu0 %v544
    %570 = vmatprep.subr.bf16.mxu0 0
    %571 = vmatpush1.bf16.msra.mxu0 %v543
    %572 = vmatprep.subr.bf16.mxu0 0
    %573 = vmatpush1.bf16.msra.mxu0 %v542
    %574 = vmatprep.subr.bf16.mxu0 0
    %575 = vmatpush2.bf16.msra.mxu0 0
    %576 = vmatprep.subr.bf16.mxu0 0
    %577 = vmatpush2.bf16.msra.mxu0 0
    %578 = vmatprep.subr.bf16.mxu0 0
    %579 = vmatpush2.bf16.msra.mxu0 0
    %580 = vmatprep.subr.bf16.mxu0 0
    %581 = vmatpush2.bf16.msra.mxu0 0
    %582 = vmatprep.subr.bf16.mxu0 0
    %583 = vmatpush2.bf16.msra.mxu0 0
    %584 = vmatprep.subr.bf16.mxu0 0
    %585 = vmatpush2.bf16.msra.mxu0 0
    %586 = vmatprep.subr.bf16.mxu0 0
    %587 = vmatpush2.bf16.msra.mxu0 0
    %588 = vmatprep.subr.bf16.mxu0 0
    %589 = vmatpush2.bf16.msra.mxu0 0
    %590 = vmatprep.mubr.bf16.mxu0 0
    %591 = vmatmul.mubr.bf16.gmra.mxu0 %v490
    %v592 = vpop.f32.mrf.mxu0
    %v593 = vadd.f32 0.0, %v592
    %v594 = vpop.f32.mrf.mxu0
    %v595 = vpop.f32.mrf.mxu0
    %v596 = vadd.f32 0.0, %v595
    %v597 = vpop.f32.mrf.mxu0
    %598 = vdwg.mxu0
    %v599 = vadd.f32 %v492, %v593
    %v600 = vadd.f32 %v493, %v596
    %v601 = vtanh.pop %v599
    %v602 = vtanh.pop %v600
    %s603 = scalar_lea.vmem [#allocation7], 32
    %604 = vst [vmem:[%s603] sm:$0xff] %v601
    %605 = vst [vmem:[%s603 + $0x8] sm:$0xff] %v602
    %v606 = vpack.c.bf16 %v602, %v601
    %s607 = scalar_lea.vmem [#allocation3], 48
    %v608 = vld [vmem:[%s607] sm:$0xff]
    %v609 = vld [vmem:[%s607 + $0x8] sm:$0xff]
    %v610 = vld [vmem:[%s3] sm:$0xf]
    %v611 = vld [vmem:[%s3 + $0x4] sm:$0xf]
    %v612 = vld [vmem:[%s3 + $0x8] sm:$0xf]
    %v613 = vld [vmem:[%s3 + $0xc] sm:$0xf]
    %v614 = vld [vmem:[%s3 + $0x10] sm:$0xf]
    %v615 = vld [vmem:[%s3 + $0x14] sm:$0xf]
    %v616 = vld [vmem:[%s3 + $0x18] sm:$0xf]
    %v617 = vld [vmem:[%s3 + $0x1c] sm:$0xf]
    %v618 = vld [vmem:[%s3 + $0x20] sm:$0xf]
    %v619 = vld [vmem:[%s3 + $0x24] sm:$0xf]
    %v620 = vld [vmem:[%s3 + $0x28] sm:$0xf]
    %v621 = vld [vmem:[%s3 + $0x2c] sm:$0xf]
    %v622 = vld [vmem:[%s3 + $0x30] sm:$0xf]
    %v623 = vld [vmem:[%s3 + $0x34] sm:$0xf]
    %v624 = vld [vmem:[%s3 + $0x38] sm:$0xf]
    %v625 = vld [vmem:[%s3 + $0x3c] sm:$0xf]
    %v642 = vunpack.c.l.b16 %v610
    %v643 = vunpack.c.l.b16 %v611
    %v644 = vunpack.c.l.b16 %v612
    %v645 = vunpack.c.l.b16 %v613
    %v646 = vunpack.c.l.b16 %v614
    %v647 = vunpack.c.l.b16 %v615
    %v648 = vunpack.c.l.b16 %v616
    %v649 = vunpack.c.l.b16 %v617
    %v650 = vunpack.c.l.b16 %v618
    %v651 = vunpack.c.l.b16 %v619
    %v652 = vunpack.c.l.b16 %v620
    %v653 = vunpack.c.l.b16 %v621
    %v654 = vunpack.c.l.b16 %v622
    %v655 = vunpack.c.l.b16 %v623
    %v656 = vunpack.c.l.b16 %v624
    %v657 = vunpack.c.l.b16 %v625
    %v658 = vpack.c.b16 %v643, %v642
    %v659 = vpack.c.b16 %v645, %v644
    %v660 = vpack.c.b16 %v647, %v646
    %v661 = vpack.c.b16 %v649, %v648
    %v662 = vpack.c.b16 %v651, %v650
    %v663 = vpack.c.b16 %v653, %v652
    %v664 = vpack.c.b16 %v655, %v654
    %v665 = vpack.c.b16 %v657, %v656
    %674 = vmatprep.subr.bf16.mxu0 0
    %675 = vmatpush1.bf16.msra.mxu0 %v665
    %676 = vmatprep.subr.bf16.mxu0 0
    %677 = vmatpush1.bf16.msra.mxu0 %v664
    %678 = vmatprep.subr.bf16.mxu0 0
    %679 = vmatpush1.bf16.msra.mxu0 %v663
    %680 = vmatprep.subr.bf16.mxu0 0
    %681 = vmatpush1.bf16.msra.mxu0 %v662
    %682 = vmatprep.subr.bf16.mxu0 0
    %683 = vmatpush1.bf16.msra.mxu0 %v661
    %684 = vmatprep.subr.bf16.mxu0 0
    %685 = vmatpush1.bf16.msra.mxu0 %v660
    %686 = vmatprep.subr.bf16.mxu0 0
    %687 = vmatpush1.bf16.msra.mxu0 %v659
    %688 = vmatprep.subr.bf16.mxu0 0
    %689 = vmatpush1.bf16.msra.mxu0 %v658
    %690 = vmatprep.subr.bf16.mxu0 0
    %691 = vmatpush2.bf16.msra.mxu0 0
    %692 = vmatprep.subr.bf16.mxu0 0
    %693 = vmatpush2.bf16.msra.mxu0 0
    %694 = vmatprep.subr.bf16.mxu0 0
    %695 = vmatpush2.bf16.msra.mxu0 0
    %696 = vmatprep.subr.bf16.mxu0 0
    %697 = vmatpush2.bf16.msra.mxu0 0
    %698 = vmatprep.subr.bf16.mxu0 0
    %699 = vmatpush2.bf16.msra.mxu0 0
    %700 = vmatprep.subr.bf16.mxu0 0
    %701 = vmatpush2.bf16.msra.mxu0 0
    %702 = vmatprep.subr.bf16.mxu0 0
    %703 = vmatpush2.bf16.msra.mxu0 0
    %704 = vmatprep.subr.bf16.mxu0 0
    %705 = vmatpush2.bf16.msra.mxu0 0
    %706 = vmatprep.mubr.bf16.mxu0 0
    %707 = vmatmul.mubr.bf16.gmra.mxu0 %v606
    %v708 = vpop.f32.mrf.mxu0
    %v709 = vadd.f32 0.0, %v708
    %v710 = vpop.f32.mrf.mxu0
    %v711 = vpop.f32.mrf.mxu0
    %v712 = vadd.f32 0.0, %v711
    %v713 = vpop.f32.mrf.mxu0
    %714 = vdwg.mxu0
    %v715 = vadd.f32 %v608, %v709
    %v716 = vadd.f32 %v609, %v712
    %v717 = vtanh.pop %v715
    %v718 = vtanh.pop %v716
    %s719 = scalar_lea.vmem [#allocation7], 48
    %720 = vst [vmem:[%s719] sm:$0xff] %v717
    %721 = vst [vmem:[%s719 + $0x8] sm:$0xff] %v718
    %v722 = vpack.c.bf16 %v718, %v717
    %s723 = scalar_lea.vmem [#allocation3], 64
    %v724 = vld [vmem:[%s723] sm:$0xff]
    %v725 = vld [vmem:[%s723 + $0x8] sm:$0xff]
    %v726 = vld [vmem:[%s3] sm:$0xf]
    %v727 = vld [vmem:[%s3 + $0x4] sm:$0xf]
    %v728 = vld [vmem:[%s3 + $0x8] sm:$0xf]
    %v729 = vld [vmem:[%s3 + $0xc] sm:$0xf]
    %v730 = vld [vmem:[%s3 + $0x10] sm:$0xf]
    %v731 = vld [vmem:[%s3 + $0x14] sm:$0xf]
    %v732 = vld [vmem:[%s3 + $0x18] sm:$0xf]
    %v733 = vld [vmem:[%s3 + $0x1c] sm:$0xf]
    %v734 = vld [vmem:[%s3 + $0x20] sm:$0xf]
    %v735 = vld [vmem:[%s3 + $0x24] sm:$0xf]
    %v736 = vld [vmem:[%s3 + $0x28] sm:$0xf]
    %v737 = vld [vmem:[%s3 + $0x2c] sm:$0xf]
    %v738 = vld [vmem:[%s3 + $0x30] sm:$0xf]
    %v739 = vld [vmem:[%s3 + $0x34] sm:$0xf]
    %v740 = vld [vmem:[%s3 + $0x38] sm:$0xf]
    %v741 = vld [vmem:[%s3 + $0x3c] sm:$0xf]
    %v758 = vunpack.c.l.b16 %v726
    %v759 = vunpack.c.l.b16 %v727
    %v760 = vunpack.c.l.b16 %v728
    %v761 = vunpack.c.l.b16 %v729
    %v762 = vunpack.c.l.b16 %v730
    %v763 = vunpack.c.l.b16 %v731
    %v764 = vunpack.c.l.b16 %v732
    %v765 = vunpack.c.l.b16 %v733
    %v766 = vunpack.c.l.b16 %v734
    %v767 = vunpack.c.l.b16 %v735
    %v768 = vunpack.c.l.b16 %v736
    %v769 = vunpack.c.l.b16 %v737
    %v770 = vunpack.c.l.b16 %v738
    %v771 = vunpack.c.l.b16 %v739
    %v772 = vunpack.c.l.b16 %v740
    %v773 = vunpack.c.l.b16 %v741
    %v774 = vpack.c.b16 %v759, %v758
    %v775 = vpack.c.b16 %v761, %v760
    %v776 = vpack.c.b16 %v763, %v762
    %v777 = vpack.c.b16 %v765, %v764
    %v778 = vpack.c.b16 %v767, %v766
    %v779 = vpack.c.b16 %v769, %v768
    %v780 = vpack.c.b16 %v771, %v770
    %v781 = vpack.c.b16 %v773, %v772
    %790 = vmatprep.subr.bf16.mxu0 0
    %791 = vmatpush1.bf16.msra.mxu0 %v781
    %792 = vmatprep.subr.bf16.mxu0 0
    %793 = vmatpush1.bf16.msra.mxu0 %v780
    %794 = vmatprep.subr.bf16.mxu0 0
    %795 = vmatpush1.bf16.msra.mxu0 %v779
    %796 = vmatprep.subr.bf16.mxu0 0
    %797 = vmatpush1.bf16.msra.mxu0 %v778
    %798 = vmatprep.subr.bf16.mxu0 0
    %799 = vmatpush1.bf16.msra.mxu0 %v777
    %800 = vmatprep.subr.bf16.mxu0 0
    %801 = vmatpush1.bf16.msra.mxu0 %v776
    %802 = vmatprep.subr.bf16.mxu0 0
    %803 = vmatpush1.bf16.msra.mxu0 %v775
    %804 = vmatprep.subr.bf16.mxu0 0
    %805 = vmatpush1.bf16.msra.mxu0 %v774
    %806 = vmatprep.subr.bf16.mxu0 0
    %807 = vmatpush2.bf16.msra.mxu0 0
    %808 = vmatprep.subr.bf16.mxu0 0
    %809 = vmatpush2.bf16.msra.mxu0 0
    %810 = vmatprep.subr.bf16.mxu0 0
    %811 = vmatpush2.bf16.msra.mxu0 0
    %812 = vmatprep.subr.bf16.mxu0 0
    %813 = vmatpush2.bf16.msra.mxu0 0
    %814 = vmatprep.subr.bf16.mxu0 0
    %815 = vmatpush2.bf16.msra.mxu0 0
    %816 = vmatprep.subr.bf16.mxu0 0
    %817 = vmatpush2.bf16.msra.mxu0 0
    %818 = vmatprep.subr.bf16.mxu0 0
    %819 = vmatpush2.bf16.msra.mxu0 0
    %820 = vmatprep.subr.bf16.mxu0 0
    %821 = vmatpush2.bf16.msra.mxu0 0
    %822 = vmatprep.mubr.bf16.mxu0 0
    %823 = vmatmul.mubr.bf16.gmra.mxu0 %v722
    %v824 = vpop.f32.mrf.mxu0
    %v825 = vadd.f32 0.0, %v824
    %v826 = vpop.f32.mrf.mxu0
    %v827 = vpop.f32.mrf.mxu0
    %v828 = vadd.f32 0.0, %v827
    %v829 = vpop.f32.mrf.mxu0
    %830 = vdwg.mxu0
    %v831 = vadd.f32 %v724, %v825
    %v832 = vadd.f32 %v725, %v828
    %v833 = vtanh.pop %v831
    %v834 = vtanh.pop %v832
    %s835 = scalar_lea.vmem [#allocation7], 64
    %836 = vst [vmem:[%s835] sm:$0xff] %v833
    %837 = vst [vmem:[%s835 + $0x8] sm:$0xff] %v834
    %v838 = vpack.c.bf16 %v834, %v833
    %s839 = scalar_lea.vmem [#allocation3], 80
    %v840 = vld [vmem:[%s839] sm:$0xff]
    %v841 = vld [vmem:[%s839 + $0x8] sm:$0xff]
    %v842 = vld [vmem:[%s3] sm:$0xf]
    %v843 = vld [vmem:[%s3 + $0x4] sm:$0xf]
    %v844 = vld [vmem:[%s3 + $0x8] sm:$0xf]
    %v845 = vld [vmem:[%s3 + $0xc] sm:$0xf]
    %v846 = vld [vmem:[%s3 + $0x10] sm:$0xf]
    %v847 = vld [vmem:[%s3 + $0x14] sm:$0xf]
    %v848 = vld [vmem:[%s3 + $0x18] sm:$0xf]
    %v849 = vld [vmem:[%s3 + $0x1c] sm:$0xf]
    %v850 = vld [vmem:[%s3 + $0x20] sm:$0xf]
    %v851 = vld [vmem:[%s3 + $0x24] sm:$0xf]
    %v852 = vld [vmem:[%s3 + $0x28] sm:$0xf]
    %v853 = vld [vmem:[%s3 + $0x2c] sm:$0xf]
    %v854 = vld [vmem:[%s3 + $0x30] sm:$0xf]
    %v855 = vld [vmem:[%s3 + $0x34] sm:$0xf]
    %v856 = vld [vmem:[%s3 + $0x38] sm:$0xf]
    %v857 = vld [vmem:[%s3 + $0x3c] sm:$0xf]
    %v874 = vunpack.c.l.b16 %v842
    %v875 = vunpack.c.l.b16 %v843
    %v876 = vunpack.c.l.b16 %v844
    %v877 = vunpack.c.l.b16 %v845
    %v878 = vunpack.c.l.b16 %v846
    %v879 = vunpack.c.l.b16 %v847
    %v880 = vunpack.c.l.b16 %v848
    %v881 = vunpack.c.l.b16 %v849
    %v882 = vunpack.c.l.b16 %v850
    %v883 = vunpack.c.l.b16 %v851
    %v884 = vunpack.c.l.b16 %v852
    %v885 = vunpack.c.l.b16 %v853
    %v886 = vunpack.c.l.b16 %v854
    %v887 = vunpack.c.l.b16 %v855
    %v888 = vunpack.c.l.b16 %v856
    %v889 = vunpack.c.l.b16 %v857
    %v890 = vpack.c.b16 %v875, %v874
    %v891 = vpack.c.b16 %v877, %v876
    %v892 = vpack.c.b16 %v879, %v878
    %v893 = vpack.c.b16 %v881, %v880
    %v894 = vpack.c.b16 %v883, %v882
    %v895 = vpack.c.b16 %v885, %v884
    %v896 = vpack.c.b16 %v887, %v886
    %v897 = vpack.c.b16 %v889, %v888
    %906 = vmatprep.subr.bf16.mxu0 0
    %907 = vmatpush1.bf16.msra.mxu0 %v897
    %908 = vmatprep.subr.bf16.mxu0 0
    %909 = vmatpush1.bf16.msra.mxu0 %v896
    %910 = vmatprep.subr.bf16.mxu0 0
    %911 = vmatpush1.bf16.msra.mxu0 %v895
    %912 = vmatprep.subr.bf16.mxu0 0
    %913 = vmatpush1.bf16.msra.mxu0 %v894
    %914 = vmatprep.subr.bf16.mxu0 0
    %915 = vmatpush1.bf16.msra.mxu0 %v893
    %916 = vmatprep.subr.bf16.mxu0 0
    %917 = vmatpush1.bf16.msra.mxu0 %v892
    %918 = vmatprep.subr.bf16.mxu0 0
    %919 = vmatpush1.bf16.msra.mxu0 %v891
    %920 = vmatprep.subr.bf16.mxu0 0
    %921 = vmatpush1.bf16.msra.mxu0 %v890
    %922 = vmatprep.subr.bf16.mxu0 0
    %923 = vmatpush2.bf16.msra.mxu0 0
    %924 = vmatprep.subr.bf16.mxu0 0
    %925 = vmatpush2.bf16.msra.mxu0 0
    %926 = vmatprep.subr.bf16.mxu0 0
    %927 = vmatpush2.bf16.msra.mxu0 0
    %928 = vmatprep.subr.bf16.mxu0 0
    %929 = vmatpush2.bf16.msra.mxu0 0
    %930 = vmatprep.subr.bf16.mxu0 0
    %931 = vmatpush2.bf16.msra.mxu0 0
    %932 = vmatprep.subr.bf16.mxu0 0
    %933 = vmatpush2.bf16.msra.mxu0 0
    %934 = vmatprep.subr.bf16.mxu0 0
    %935 = vmatpush2.bf16.msra.mxu0 0
    %936 = vmatprep.subr.bf16.mxu0 0
    %937 = vmatpush2.bf16.msra.mxu0 0
    %938 = vmatprep.mubr.bf16.mxu0 0
    %939 = vmatmul.mubr.bf16.gmra.mxu0 %v838
    %v940 = vpop.f32.mrf.mxu0
    %v941 = vadd.f32 0.0, %v940
    %v942 = vpop.f32.mrf.mxu0
    %v943 = vpop.f32.mrf.mxu0
    %v944 = vadd.f32 0.0, %v943
    %v945 = vpop.f32.mrf.mxu0
    %946 = vdwg.mxu0
    %v947 = vadd.f32 %v840, %v941
    %v948 = vadd.f32 %v841, %v944
    %v949 = vtanh.pop %v947
    %v950 = vtanh.pop %v948
    %s951 = scalar_lea.vmem [#allocation7], 80
    %952 = vst [vmem:[%s951] sm:$0xff] %v949
    %953 = vst [vmem:[%s951 + $0x8] sm:$0xff] %v950
    %v954 = vpack.c.bf16 %v950, %v949
    %s955 = scalar_lea.vmem [#allocation3], 96
    %v956 = vld [vmem:[%s955] sm:$0xff]
    %v957 = vld [vmem:[%s955 + $0x8] sm:$0xff]
    %v958 = vld [vmem:[%s3] sm:$0xf]
    %v959 = vld [vmem:[%s3 + $0x4] sm:$0xf]
    %v960 = vld [vmem:[%s3 + $0x8] sm:$0xf]
    %v961 = vld [vmem:[%s3 + $0xc] sm:$0xf]
    %v962 = vld [vmem:[%s3 + $0x10] sm:$0xf]
    %v963 = vld [vmem:[%s3 + $0x14] sm:$0xf]
    %v964 = vld [vmem:[%s3 + $0x18] sm:$0xf]
    %v965 = vld [vmem:[%s3 + $0x1c] sm:$0xf]
    %v966 = vld [vmem:[%s3 + $0x20] sm:$0xf]
    %v967 = vld [vmem:[%s3 + $0x24] sm:$0xf]
    %v968 = vld [vmem:[%s3 + $0x28] sm:$0xf]
    %v969 = vld [vmem:[%s3 + $0x2c] sm:$0xf]
    %v970 = vld [vmem:[%s3 + $0x30] sm:$0xf]
    %v971 = vld [vmem:[%s3 + $0x34] sm:$0xf]
    %v972 = vld [vmem:[%s3 + $0x38] sm:$0xf]
    %v973 = vld [vmem:[%s3 + $0x3c] sm:$0xf]
    %v990 = vunpack.c.l.b16 %v958
    %v991 = vunpack.c.l.b16 %v959
    %v992 = vunpack.c.l.b16 %v960
    %v993 = vunpack.c.l.b16 %v961
    %v994 = vunpack.c.l.b16 %v962
    %v995 = vunpack.c.l.b16 %v963
    %v996 = vunpack.c.l.b16 %v964
    %v997 = vunpack.c.l.b16 %v965
    %v998 = vunpack.c.l.b16 %v966
    %v999 = vunpack.c.l.b16 %v967
    %v1000 = vunpack.c.l.b16 %v968
    %v1001 = vunpack.c.l.b16 %v969
    %v1002 = vunpack.c.l.b16 %v970
    %v1003 = vunpack.c.l.b16 %v971
    %v1004 = vunpack.c.l.b16 %v972
    %v1005 = vunpack.c.l.b16 %v973
    %v1006 = vpack.c.b16 %v991, %v990
    %v1007 = vpack.c.b16 %v993, %v992
    %v1008 = vpack.c.b16 %v995, %v994
    %v1009 = vpack.c.b16 %v997, %v996
    %v1010 = vpack.c.b16 %v999, %v998
    %v1011 = vpack.c.b16 %v1001, %v1000
    %v1012 = vpack.c.b16 %v1003, %v1002
    %v1013 = vpack.c.b16 %v1005, %v1004
    %1022 = vmatprep.subr.bf16.mxu0 0
    %1023 = vmatpush1.bf16.msra.mxu0 %v1013
    %1024 = vmatprep.subr.bf16.mxu0 0
    %1025 = vmatpush1.bf16.msra.mxu0 %v1012
    %1026 = vmatprep.subr.bf16.mxu0 0
    %1027 = vmatpush1.bf16.msra.mxu0 %v1011
    %1028 = vmatprep.subr.bf16.mxu0 0
    %1029 = vmatpush1.bf16.msra.mxu0 %v1010
    %1030 = vmatprep.subr.bf16.mxu0 0
    %1031 = vmatpush1.bf16.msra.mxu0 %v1009
    %1032 = vmatprep.subr.bf16.mxu0 0
    %1033 = vmatpush1.bf16.msra.mxu0 %v1008
    %1034 = vmatprep.subr.bf16.mxu0 0
    %1035 = vmatpush1.bf16.msra.mxu0 %v1007
    %1036 = vmatprep.subr.bf16.mxu0 0
    %1037 = vmatpush1.bf16.msra.mxu0 %v1006
    %1038 = vmatprep.subr.bf16.mxu0 0
    %1039 = vmatpush2.bf16.msra.mxu0 0
    %1040 = vmatprep.subr.bf16.mxu0 0
    %1041 = vmatpush2.bf16.msra.mxu0 0
    %1042 = vmatprep.subr.bf16.mxu0 0
    %1043 = vmatpush2.bf16.msra.mxu0 0
    %1044 = vmatprep.subr.bf16.mxu0 0
    %1045 = vmatpush2.bf16.msra.mxu0 0
    %1046 = vmatprep.subr.bf16.mxu0 0
    %1047 = vmatpush2.bf16.msra.mxu0 0
    %1048 = vmatprep.subr.bf16.mxu0 0
    %1049 = vmatpush2.bf16.msra.mxu0 0
    %1050 = vmatprep.subr.bf16.mxu0 0
    %1051 = vmatpush2.bf16.msra.mxu0 0
    %1052 = vmatprep.subr.bf16.mxu0 0
    %1053 = vmatpush2.bf16.msra.mxu0 0
    %1054 = vmatprep.mubr.bf16.mxu0 0
    %1055 = vmatmul.mubr.bf16.gmra.mxu0 %v954
    %v1056 = vpop.f32.mrf.mxu0
    %v1057 = vadd.f32 0.0, %v1056
    %v1058 = vpop.f32.mrf.mxu0
    %v1059 = vpop.f32.mrf.mxu0
    %v1060 = vadd.f32 0.0, %v1059
    %v1061 = vpop.f32.mrf.mxu0
    %1062 = vdwg.mxu0
    %v1063 = vadd.f32 %v956, %v1057
    %v1064 = vadd.f32 %v957, %v1060
    %v1065 = vtanh.pop %v1063
    %v1066 = vtanh.pop %v1064
    %s1067 = scalar_lea.vmem [#allocation7], 96
    %1068 = vst [vmem:[%s1067] sm:$0xff] %v1065
    %1069 = vst [vmem:[%s1067 + $0x8] sm:$0xff] %v1066
    %v1070 = vpack.c.bf16 %v1066, %v1065
    %s1071 = scalar_lea.vmem [#allocation3], 112
    %v1072 = vld [vmem:[%s1071] sm:$0xff]
    %v1073 = vld [vmem:[%s1071 + $0x8] sm:$0xff]
    %v1074 = vld [vmem:[%s3] sm:$0xf]
    %v1075 = vld [vmem:[%s3 + $0x4] sm:$0xf]
    %v1076 = vld [vmem:[%s3 + $0x8] sm:$0xf]
    %v1077 = vld [vmem:[%s3 + $0xc] sm:$0xf]
    %v1078 = vld [vmem:[%s3 + $0x10] sm:$0xf]
    %v1079 = vld [vmem:[%s3 + $0x14] sm:$0xf]
    %v1080 = vld [vmem:[%s3 + $0x18] sm:$0xf]
    %v1081 = vld [vmem:[%s3 + $0x1c] sm:$0xf]
    %v1082 = vld [vmem:[%s3 + $0x20] sm:$0xf]
    %v1083 = vld [vmem:[%s3 + $0x24] sm:$0xf]
    %v1084 = vld [vmem:[%s3 + $0x28] sm:$0xf]
    %v1085 = vld [vmem:[%s3 + $0x2c] sm:$0xf]
    %v1086 = vld [vmem:[%s3 + $0x30] sm:$0xf]
    %v1087 = vld [vmem:[%s3 + $0x34] sm:$0xf]
    %v1088 = vld [vmem:[%s3 + $0x38] sm:$0xf]
    %v1089 = vld [vmem:[%s3 + $0x3c] sm:$0xf]
    %v1106 = vunpack.c.l.b16 %v1074
    %v1107 = vunpack.c.l.b16 %v1075
    %v1108 = vunpack.c.l.b16 %v1076
    %v1109 = vunpack.c.l.b16 %v1077
    %v1110 = vunpack.c.l.b16 %v1078
    %v1111 = vunpack.c.l.b16 %v1079
    %v1112 = vunpack.c.l.b16 %v1080
    %v1113 = vunpack.c.l.b16 %v1081
    %v1114 = vunpack.c.l.b16 %v1082
    %v1115 = vunpack.c.l.b16 %v1083
    %v1116 = vunpack.c.l.b16 %v1084
    %v1117 = vunpack.c.l.b16 %v1085
    %v1118 = vunpack.c.l.b16 %v1086
    %v1119 = vunpack.c.l.b16 %v1087
    %v1120 = vunpack.c.l.b16 %v1088
    %v1121 = vunpack.c.l.b16 %v1089
    %v1122 = vpack.c.b16 %v1107, %v1106
    %v1123 = vpack.c.b16 %v1109, %v1108
    %v1124 = vpack.c.b16 %v1111, %v1110
    %v1125 = vpack.c.b16 %v1113, %v1112
    %v1126 = vpack.c.b16 %v1115, %v1114
    %v1127 = vpack.c.b16 %v1117, %v1116
    %v1128 = vpack.c.b16 %v1119, %v1118
    %v1129 = vpack.c.b16 %v1121, %v1120
    %1138 = vmatprep.subr.bf16.mxu0 0
    %1139 = vmatpush1.bf16.msra.mxu0 %v1129
    %1140 = vmatprep.subr.bf16.mxu0 0
    %1141 = vmatpush1.bf16.msra.mxu0 %v1128
    %1142 = vmatprep.subr.bf16.mxu0 0
    %1143 = vmatpush1.bf16.msra.mxu0 %v1127
    %1144 = vmatprep.subr.bf16.mxu0 0
    %1145 = vmatpush1.bf16.msra.mxu0 %v1126
    %1146 = vmatprep.subr.bf16.mxu0 0
    %1147 = vmatpush1.bf16.msra.mxu0 %v1125
    %1148 = vmatprep.subr.bf16.mxu0 0
    %1149 = vmatpush1.bf16.msra.mxu0 %v1124
    %1150 = vmatprep.subr.bf16.mxu0 0
    %1151 = vmatpush1.bf16.msra.mxu0 %v1123
    %1152 = vmatprep.subr.bf16.mxu0 0
    %1153 = vmatpush1.bf16.msra.mxu0 %v1122
    %1154 = vmatprep.subr.bf16.mxu0 0
    %1155 = vmatpush2.bf16.msra.mxu0 0
    %1156 = vmatprep.subr.bf16.mxu0 0
    %1157 = vmatpush2.bf16.msra.mxu0 0
    %1158 = vmatprep.subr.bf16.mxu0 0
    %1159 = vmatpush2.bf16.msra.mxu0 0
    %1160 = vmatprep.subr.bf16.mxu0 0
    %1161 = vmatpush2.bf16.msra.mxu0 0
    %1162 = vmatprep.subr.bf16.mxu0 0
    %1163 = vmatpush2.bf16.msra.mxu0 0
    %1164 = vmatprep.subr.bf16.mxu0 0
    %1165 = vmatpush2.bf16.msra.mxu0 0
    %1166 = vmatprep.subr.bf16.mxu0 0
    %1167 = vmatpush2.bf16.msra.mxu0 0
    %1168 = vmatprep.subr.bf16.mxu0 0
    %1169 = vmatpush2.bf16.msra.mxu0 0
    %1170 = vmatprep.mubr.bf16.mxu0 0
    %1171 = vmatmul.mubr.bf16.gmra.mxu0 %v1070
    %v1172 = vpop.f32.mrf.mxu0
    %v1173 = vadd.f32 0.0, %v1172
    %v1174 = vpop.f32.mrf.mxu0
    %v1175 = vpop.f32.mrf.mxu0
    %v1176 = vadd.f32 0.0, %v1175
    %v1177 = vpop.f32.mrf.mxu0
    %1178 = vdwg.mxu0
    %v1179 = vadd.f32 %v1072, %v1173
    %v1180 = vadd.f32 %v1073, %v1176
    %v1181 = vtanh.pop %v1179
    %v1182 = vtanh.pop %v1180
    %s1183 = scalar_lea.vmem [#allocation7], 112
    %1184 = vst [vmem:[%s1183] sm:$0xff] %v1181
    %1185 = vst [vmem:[%s1183 + $0x8] sm:$0xff] %v1182
    %v1186 = vpack.c.bf16 %v1182, %v1181
    %v1188 = vunpack.c.l.b16 %v1186
    %v1189 = vunpack.c.h.b16 %v1186
    %v1190 = vpack.c.b16 %v1188, %v1188
    %v1191 = vpack.c.b16 %v1189, %v1189
    %1194 = vst [vmem:[#allocation2] sm:$0xf] %v1190
    %1195 = vst [vmem:[#allocation2 + $0x4] sm:$0xf] %v1191
    // Predicated region
    $region30: #{tpu_custom_call.1} parent=1 // pred_check
      _
    $region31: #{tpu_custom_call.1} parent=1 // pred_check_branch
      %1197 = sbr.rel (0) target = $region33
    $region32: #{tpu_custom_call.1} parent=1 // pred_region
      %s1199 = ssub.s32 2048, 2048
      %1200 = vsyncadd [#allocation6], %s1199
      %s1201 = sshll.u32 [#allocation7], 4
      %s1202 = int_to_ptr.vmem [resolvable:$true] %s1201
      %1207 = dma.vmem_to_hbm [thread:$0]  %s1202, 2048, %s5, [#allocation6], 128, 128, 8
    $region33: #{tpu_custom_call.1} parent=1 // pred_fallthru
      _
    // Predicated region
    $region34: #{tpu_custom_call.1} parent=1 // pred_check
      _
    $region35: #{tpu_custom_call.1} parent=1 // pred_check_branch
      %1209 = sbr.rel (0) target = $region37
    $region36: #{tpu_custom_call.1} parent=1 // pred_region
      %1210 = dma.done [#allocation6], 2048
    $region37: #{tpu_custom_call.1} parent=1 // pred_fallthru
      _
    %1211 = vsyncpa [#allocation5], 1
    %1212 = vsyncpa [#allocation6], 1

</llo_original>
